<compile_context>
chip_gen: v6e
topology: v6e:2x2x1
jax: 0.10.0
libtpu: 0.0.40
codegen_flags: <defaults>
</compile_context>

<pallas_src>
import functools

import jax
import jax.numpy as jnp
from jax.experimental import pallas as pl
from jax.experimental.pallas import tpu as pltpu


def value_net_kernel(xt_ref, w1_ref, b1_ref, w2_ref, b2_ref, o_ref):
    # fc1: h^T = relu(W1 @ x^T + b1)  -- MXU matmul; hidden on sublanes, batch on lanes.
    ht = jnp.dot(w1_ref[...], xt_ref[...], preferred_element_type=jnp.float32)
    ht = jnp.maximum(ht + b1_ref[...], 0.0)                      # (Hp, TB)  VPU, f32
    # fc2 (out_features == 1): VPU multiply + sublane (XLU) reduction, no MXU.
    v = jnp.sum(ht * w2_ref[...], axis=0, keepdims=True)         # (1, TB)   XLU reduce
    v = v + b2_ref[0, 0]                                         # SMEM scalar bias
    o_ref[...] = v.astype(o_ref.dtype)                           # lane-dense store


def _round_up(x, m):
    return ((x + m - 1) // m) * m


def _pick_tile(batch, block_batch):
    # Tiny batches: a single tile equal to the full dim (always a legal block).
    if batch <= 256:
        return batch, 1
    # Otherwise lane-dense tiles (multiples of 128), at least 2 and an even
    # count (both v7x TensorCores get balanced work), capped at block_batch so
    # each tile stays large enough to amortize per-grid-step overhead.
    nt = max(2, pl.cdiv(batch, block_batch))
    if nt % 2:
        nt += 1
    tb = min(block_batch, _round_up(pl.cdiv(batch, nt), 128))
    return tb, pl.cdiv(batch, tb)


def _forward_from_xt(x_t, w1, b1, w2, b2, block_batch):
    state_dim, batch = x_t.shape
    hidden = w1.shape[0]
    out_dtype = x_t.dtype

    # Pad hidden only to the sublane granule (8); padded rows contribute exact 0.
    hpad = _round_up(hidden, 8)
    dh = hpad - hidden
    w1p = jnp.pad(w1, ((0, dh), (0, 0)))                                        # (Hp, S)
    b1p = jnp.pad(b1.astype(jnp.float32), (0, dh)).reshape(hpad, 1)              # (Hp, 1)
    w2p = jnp.pad(w2.reshape(hidden).astype(jnp.float32), (0, dh)).reshape(hpad, 1)
    b2s = b2.reshape(1, 1).astype(jnp.float32)                                   # SMEM scalar

    tb, num_tiles = _pick_tile(batch, block_batch)

    cost = pl.CostEstimate(
        flops=2 * batch * state_dim * hidden + 4 * batch * hidden,
        transcendentals=0,
        bytes_accessed=(x_t.size * x_t.dtype.itemsize
                        + w1.size * w1.dtype.itemsize
                        + (2 * hidden + 1) * 4
                        + batch * out_dtype.itemsize),
    )

    out = pl.pallas_call(
        value_net_kernel,
        out_shape=jax.ShapeDtypeStruct((1, batch), out_dtype),
        grid=(num_tiles,),
        in_specs=[
            pl.BlockSpec((state_dim, tb), lambda i: (0, i)),        # x^T tile (pipelined)
            pl.BlockSpec((hpad, state_dim), lambda i: (0, 0)),      # W1 (VMEM-resident)
            pl.BlockSpec((hpad, 1), lambda i: (0, 0)),              # b1 (VMEM-resident)
            pl.BlockSpec((hpad, 1), lambda i: (0, 0)),              # w2 (VMEM-resident)
            pl.BlockSpec(memory_space=pltpu.MemorySpace.SMEM),      # b2 scalar in SMEM
        ],
        out_specs=pl.BlockSpec((1, tb), lambda i: (0, i)),          # lane-dense output
        compiler_params=pltpu.CompilerParams(
            dimension_semantics=("parallel",),   # v7x: batch tiles shard over both TCs
            vmem_limit_bytes=32 * 1024 * 1024,   # working set is a few MiB on all gens
        ),
        cost_estimate=cost,
    )(x_t, w1p, b1p, w2p, b2s)

    return out.reshape(batch, 1)


@functools.partial(jax.jit, static_argnames=("block_batch",))
def value_net_forward(x, w1, b1, w2, b2, *, block_batch=16384):
    """ValueNet forward, PyTorch layouts.

    x:  [batch, state_dim]
    w1: [hidden, state_dim]   (fc1.weight)
    b1: [hidden]
    w2: [1, hidden]           (fc2.weight)
    b2: [1]
    returns [batch, 1]
    """
    # Layout plumbing only: the kernel computes in a transposed (batch-on-lanes)
    # layout.  Producers that can emit x^T directly should call
    # value_net_forward_xt and skip this transpose.
    return _forward_from_xt(x.T, w1, b1, w2, b2, block_batch)


@functools.partial(jax.jit, static_argnames=("block_batch",))
def value_net_forward_xt(x_t, w1, b1, w2, b2, *, block_batch=16384):
    """Same forward, but x_t is already [state_dim, batch] (no wrapper transpose)."""
    return _forward_from_xt(x_t, w1, b1, w2, b2, block_batch)


def init_params(key, state_dim, hidden_dim):
    # Mimic torch.nn.Linear default init (uniform +/- 1/sqrt(fan_in)), PyTorch layouts.
    k1, k2, k3, k4 = jax.random.split(key, 4)
    bound1 = 1.0 / (state_dim ** 0.5)
    bound2 = 1.0 / (hidden_dim ** 0.5)
    w1 = jax.random.uniform(k1, (hidden_dim, state_dim), jnp.float32, -bound1, bound1)
    b1 = jax.random.uniform(k2, (hidden_dim,), jnp.float32, -bound1, bound1)
    w2 = jax.random.uniform(k3, (1, hidden_dim), jnp.float32, -bound2, bound2)
    b2 = jax.random.uniform(k4, (1,), jnp.float32, -bound2, bound2)
    return w1, b1, w2, b2


def reference_forward(x, w1, b1, w2, b2):
    h = jnp.maximum(x @ w1.T + b1, 0.0)
    return h @ w2.T + b2


if __name__ == "__main__":
    state_dim, hidden_dim, batch = 4, 32, 8
    key = jax.random.PRNGKey(0)
    kx, kp, kx2 = jax.random.split(key, 3)
    w1, b1, w2, b2 = init_params(kp, state_dim, hidden_dim)

    # Small batch (single tile).
    x = jax.random.normal(kx, (batch, state_dim), jnp.float32)
    out = value_net_forward(x, w1, b1, w2, b2)
    jax.block_until_ready(out)
    ref = reference_forward(x, w1, b1, w2, b2)
    assert out.shape == (batch, 1), out.shape
    assert jnp.allclose(out, ref, atol=1e-5, rtol=1e-5), "small-batch mismatch vs reference"

    # Larger non-multiple batch exercises the multi-tile / partial-boundary-block path.
    big = 1030
    xb = jax.random.normal(kx2, (big, state_dim), jnp.float32)
    outb = value_net_forward(xb, w1, b1, w2, b2)
    jax.block_until_ready(outb)
    refb = reference_forward(xb, w1, b1, w2, b2)
    assert outb.shape == (big, 1), outb.shape
    assert jnp.allclose(outb, refb, atol=1e-4, rtol=1e-4), "big-batch mismatch vs reference"

    # Producer-transposed entry point (no wrapper-side transpose at all).
    outt = value_net_forward_xt(xb.T, w1, b1, w2, b2)
    jax.block_until_ready(outt)
    assert jnp.allclose(outt, refb, atol=1e-4, rtol=1e-4), "xt-path mismatch vs reference"

    print("KERNEL_OK")
</pallas_src>

<mosaic_0001>
module attributes {stable_mosaic.version = 11 : i64} {
  func.func @value_net_kernel(%arg0: i32, %arg1: memref<4x8xf32, #tpu.memory_space<vmem>>, %arg2: memref<32x4xf32, #tpu.memory_space<vmem>>, %arg3: memref<32x1xf32, #tpu.memory_space<vmem>>, %arg4: memref<32x1xf32, #tpu.memory_space<vmem>>, %arg5: memref<1x1xf32, #tpu.memory_space<smem>>, %arg6: memref<1x8xf32, #tpu.memory_space<vmem>>) attributes {dimension_semantics = [#tpu.dimension_semantics<parallel>], iteration_bounds = array<i64: 1>, scalar_prefetch = 0 : i64, scratch_operands = 0 : i64, tpu.core_type = #tpu.core_type<tc>, window_params = [{transform_indices = @transform_0, window_bounds = array<i64: 4, 8>}, {pipeline_mode = #tpu.pipeline_mode<synchronous>, transform_indices = @transform_1, window_bounds = array<i64: 32, 4>}, {pipeline_mode = #tpu.pipeline_mode<synchronous>, transform_indices = @transform_2, window_bounds = array<i64: 32, 1>}, {pipeline_mode = #tpu.pipeline_mode<synchronous>, transform_indices = @transform_3, window_bounds = array<i64: 32, 1>}, {transform_indices = @transform_4, window_bounds = array<i64: 1, 1>}, {transform_indices = @transform_5, window_bounds = array<i64: 1, 8>}]} {
    %c0 = arith.constant 0 : index
    %c0_0 = arith.constant 0 : index
    %0 = vector.load %arg2[%c0, %c0_0] : memref<32x4xf32, #tpu.memory_space<vmem>>, vector<32x4xf32>
    %c0_1 = arith.constant 0 : index
    %c0_2 = arith.constant 0 : index
    %1 = vector.load %arg1[%c0_1, %c0_2] : memref<4x8xf32, #tpu.memory_space<vmem>>, vector<4x8xf32>
    %cst = arith.constant dense<0.000000e+00> : vector<32x8xf32>
    %2 = tpu.matmul %0, %1, %cst {dimension_numbers = #tpu.dot_dimension_numbers<[1], [0], [0], [1], [0, 0, 1, 1], [], []>} : vector<32x4xf32>, vector<4x8xf32>, vector<32x8xf32> -> vector<32x8xf32>
    %c0_3 = arith.constant 0 : index
    %c0_4 = arith.constant 0 : index
    %3 = vector.load %arg3[%c0_3, %c0_4] : memref<32x1xf32, #tpu.memory_space<vmem>>, vector<32x1xf32>
    %4 = vector.broadcast %3 : vector<32x1xf32> to vector<32x8xf32>
    %5 = arith.addf %2, %4 : vector<32x8xf32>
    %cst_5 = arith.constant 0.000000e+00 : f32
    %6 = vector.broadcast %cst_5 : f32 to vector<32x8xf32>
    %7 = arith.maximumf %5, %6 : vector<32x8xf32>
    %c0_6 = arith.constant 0 : index
    %c0_7 = arith.constant 0 : index
    %8 = vector.load %arg4[%c0_6, %c0_7] : memref<32x1xf32, #tpu.memory_space<vmem>>, vector<32x1xf32>
    %9 = vector.broadcast %8 : vector<32x1xf32> to vector<32x8xf32>
    %10 = arith.mulf %7, %9 : vector<32x8xf32>
    %cst_8 = arith.constant dense<0.000000e+00> : vector<8xf32>
    %11 = vector.multi_reduction <add>, %10, %cst_8 [0] : vector<32x8xf32> to vector<8xf32>
    %12 = vector.shape_cast %11 : vector<8xf32> to vector<1x8xf32>
    %c0_9 = arith.constant 0 : index
    %c0_10 = arith.constant 0 : index
    %13 = memref.load %arg5[%c0_9, %c0_10] : memref<1x1xf32, #tpu.memory_space<smem>>
    %14 = vector.broadcast %13 : f32 to vector<1x8xf32>
    %15 = arith.addf %12, %14 : vector<1x8xf32>
    %c0_11 = arith.constant 0 : index
    %c0_12 = arith.constant 0 : index
    %16 = vector.load %arg6[%c0_11, %c0_12] : memref<1x8xf32, #tpu.memory_space<vmem>>, vector<1x8xf32>
    tpu.vector_store %arg6[%c0_11, %c0_12], %15 {strides = array<i32>} : memref<1x8xf32, #tpu.memory_space<vmem>>, vector<1x8xf32>,
    return
  }
  func.func @transform_0(%arg0: i32) -> (i32, i32) {
    %c0_i32 = arith.constant 0 : i32
    %c0_i32_0 = arith.constant 0 : i32
    return %c0_i32, %arg0 : i32, i32
  }
  func.func @transform_1(%arg0: i32) -> (i32, i32) {
    %c0_i32 = arith.constant 0 : i32
    %c0_i32_0 = arith.constant 0 : i32
    %c0_i32_1 = arith.constant 0 : i32
    return %c0_i32, %c0_i32_0 : i32, i32
  }
  func.func @transform_2(%arg0: i32) -> (i32, i32) {
    %c0_i32 = arith.constant 0 : i32
    %c0_i32_0 = arith.constant 0 : i32
    %c0_i32_1 = arith.constant 0 : i32
    return %c0_i32, %c0_i32_0 : i32, i32
  }
  func.func @transform_3(%arg0: i32) -> (i32, i32) {
    %c0_i32 = arith.constant 0 : i32
    %c0_i32_0 = arith.constant 0 : i32
    %c0_i32_1 = arith.constant 0 : i32
    return %c0_i32, %c0_i32_0 : i32, i32
  }
  func.func @transform_4(%arg0: i32) -> (i32, i32) {
    %c0_i32 = arith.constant 0 : i32
    %c0_i32_0 = arith.constant 0 : i32
    %c0_i32_1 = arith.constant 0 : i32
    return %c0_i32, %c0_i32_0 : i32, i32
  }
  func.func @transform_5(%arg0: i32) -> (i32, i32) {
    %c0_i32 = arith.constant 0 : i32
    %c0_i32_0 = arith.constant 0 : i32
    return %c0_i32, %arg0 : i32, i32
  }
}

</mosaic_0001>

<llo_original>
// kernel: value_net_forward.1
$region0: #{value_net_forward.1}
  #allocation0 [shape = 'u32[]', space=smem, size = 0x4, offset = 0x4, fixed_abs, tag = 'smem constant byte address 0x4 - core index']
  #allocation1 [shape = 'u32[144,128]{1,0:T(1,128)}', space=vmem, size = 0x12000, scoped, tag = 'internal scratch']
  #allocation2 [shape = 'f32[1,1]{1,0:T(1,128)S(6)}', space=smem, size = 0x200, scoped, tag = 'scoped memory for value_net_forward.1']
  %s0 = inlined_call_operand.vmem [shape: f32[4,8], index: 0, kind: input, shape index: {}]
  %s1 = inlined_call_operand.vmem [shape: f32[32,4], index: 1, kind: input, shape index: {}]
  %s2 = inlined_call_operand.vmem [shape: f32[32,1], index: 2, kind: input, shape index: {}]
  %s3 = inlined_call_operand.vmem [shape: f32[32,1], index: 3, kind: input, shape index: {}]
  %s4 = inlined_call_operand.<no memory space> [shape: f32[1,1], index: 4, kind: input, shape index: {}]
  %s5 = inlined_call_operand.hbm [shape: f32[1,8], index: 5, kind: output, shape index: {}]
  %s6 = sld [smem:[#allocation0]]
  $region30: #{value_net_forward.1} parent=0
    _
  %s8 = ssub.s32 1, %s6
  %s9 = scalar_select 0, %s8, %s6
  %10 = sst [smem:[#allocation2]] %s4
  $region1: #{value_net_forward.1} parent=0
    #allocation3 [shape = 'u8[512]{0}', space=vmem, size = 0x400, scoped, tag = 'output window, operand 0, single buffered']
    #allocation4 [shape = 's32[1]{0}', space=sflag, size = 0x4, scoped, tag = 'scoped memory for value_net_forward.1']
    %11 = vsyncpa [#allocation4], 0
    // Predicated region
    $region2: #{value_net_forward.1} parent=1 // pred_check
      _
    $region3: #{value_net_forward.1} parent=1 // pred_check_branch
      %13 = sbr.rel (0) target = $region5
    $region4: #{value_net_forward.1} parent=1 // pred_region
      _
    $region5: #{value_net_forward.1} parent=1 // pred_fallthru
      _
    // Predicated region
    $region6: #{value_net_forward.1} parent=1 // pred_check
      _
    $region7: #{value_net_forward.1} parent=1 // pred_check_branch
      %15 = sbr.rel (0) target = $region9
    $region8: #{value_net_forward.1} parent=1 // pred_region
      _
    $region9: #{value_net_forward.1} parent=1 // pred_fallthru
      _
    // Predicated region
    $region10: #{value_net_forward.1} parent=1 // pred_check
      _
    $region11: #{value_net_forward.1} parent=1 // pred_check_branch
      %17 = sbr.rel (0) target = $region13
    $region12: #{value_net_forward.1} parent=1 // pred_region
      _
    $region13: #{value_net_forward.1} parent=1 // pred_fallthru
      _
    // Predicated region
    $region14: #{value_net_forward.1} parent=1 // pred_check
      _
    $region15: #{value_net_forward.1} parent=1 // pred_check_branch
      %19 = sbr.rel (0) target = $region17
    $region16: #{value_net_forward.1} parent=1 // pred_region
      _
    $region17: #{value_net_forward.1} parent=1 // pred_fallthru
      _
    // Predicated region
    $region18: #{value_net_forward.1} parent=1 // pred_check
      _
    $region19: #{value_net_forward.1} parent=1 // pred_check_branch
      %21 = sbr.rel (0) target = $region21
    $region20: #{value_net_forward.1} parent=1 // pred_region
      _
    $region21: #{value_net_forward.1} parent=1 // pred_fallthru
      _
    %v22 = vld [vmem:[%s1] sm:$0xff]
    %v23 = vld [vmem:[%s1 + $0x8] sm:$0xff]
    %v24 = vld [vmem:[%s1 + $0x10] sm:$0xff]
    %v25 = vld [vmem:[%s1 + $0x18] sm:$0xff]
    %v26 = vld [vmem:[%s0] sm:$0xf]
    %v27 = vld [vmem:[%s2] sm:$0xff]
    %v28 = vld [vmem:[%s2 + $0x8] sm:$0xff]
    %v29 = vld [vmem:[%s2 + $0x10] sm:$0xff]
    %v30 = vld [vmem:[%s2 + $0x18] sm:$0xff]
    %32 = vset.pattern.permute.xlu0 0
    %33 = vperm.xlu0 %32, %v27
    %v34 = vpop.permute.xlu0 %33
    %37 = vset.pattern.permute.xlu0 0
    %38 = vperm.xlu0 %37, %v28
    %v39 = vpop.permute.xlu0 %38
    %42 = vset.pattern.permute.xlu0 0
    %43 = vperm.xlu0 %42, %v29
    %v44 = vpop.permute.xlu0 %43
    %47 = vset.pattern.permute.xlu0 0
    %48 = vperm.xlu0 %47, %v30
    %v49 = vpop.permute.xlu0 %48
    %vm51 = vcmask 31744
    %v53 = vsel %vm51, %v22, 0
    %v56 = vsel %vm51, %v23, 0
    %v59 = vsel %vm51, %v24, 0
    %v62 = vsel %vm51, %v25, 0
    %vm64 = vcmask 1043456
    %v66 = vsel %vm64, %v26, 0
    %68 = vmatprep.subr.mxu0 0.0
    %69 = vmatpush1.msra.mxu0 0.0
    %70 = vmatprep.subr.mxu0 0.0
    %71 = vmatpush1.msra.mxu0 0.0
    %72 = vmatprep.subr.mxu0 0.0
    %73 = vmatpush1.msra.mxu0 0.0
    %74 = vmatprep.subr.mxu0 0.0
    %75 = vmatpush1.msra.mxu0 0.0
    %76 = vmatprep.subr.mxu0 0.0
    %77 = vmatpush1.msra.mxu0 0.0
    %78 = vmatprep.subr.mxu0 0.0
    %79 = vmatpush1.msra.mxu0 0.0
    %80 = vmatprep.subr.mxu0 0.0
    %81 = vmatpush1.msra.mxu0 0.0
    %82 = vmatprep.subr.mxu0 0.0
    %83 = vmatpush1.msra.mxu0 0.0
    %84 = vmatprep.subr.mxu0 0.0
    %85 = vmatpush1.msra.mxu0 0.0
    %86 = vmatprep.subr.mxu0 0.0
    %87 = vmatpush1.msra.mxu0 0.0
    %88 = vmatprep.subr.mxu0 0.0
    %89 = vmatpush1.msra.mxu0 0.0
    %90 = vmatprep.subr.mxu0 0.0
    %91 = vmatpush1.msra.mxu0 0.0
    %92 = vmatprep.subr.mxu0 0.0
    %93 = vmatpush1.msra.mxu0 0.0
    %94 = vmatprep.subr.mxu0 0.0
    %95 = vmatpush1.msra.mxu0 0.0
    %96 = vmatprep.subr.mxu0 0.0
    %97 = vmatpush1.msra.mxu0 0.0
    %98 = vmatprep.subr.mxu0 0.0
    %99 = vmatpush1.msra.mxu0 %v66
    %100 = vmatprep.subr.mxu0 0.0
    %101 = vmatpush2.msra.mxu0 0.0
    %102 = vmatprep.subr.mxu0 0.0
    %103 = vmatpush2.msra.mxu0 0.0
    %104 = vmatprep.subr.mxu0 0.0
    %105 = vmatpush2.msra.mxu0 0.0
    %106 = vmatprep.subr.mxu0 0.0
    %107 = vmatpush2.msra.mxu0 0.0
    %108 = vmatprep.subr.mxu0 0.0
    %109 = vmatpush2.msra.mxu0 0.0
    %110 = vmatprep.subr.mxu0 0.0
    %111 = vmatpush2.msra.mxu0 0.0
    %112 = vmatprep.subr.mxu0 0.0
    %113 = vmatpush2.msra.mxu0 0.0
    %114 = vmatprep.subr.mxu0 0.0
    %115 = vmatpush2.msra.mxu0 0.0
    %116 = vmatprep.subr.mxu0 0.0
    %117 = vmatpush2.msra.mxu0 0.0
    %118 = vmatprep.subr.mxu0 0.0
    %119 = vmatpush2.msra.mxu0 0.0
    %120 = vmatprep.subr.mxu0 0.0
    %121 = vmatpush2.msra.mxu0 0.0
    %122 = vmatprep.subr.mxu0 0.0
    %123 = vmatpush2.msra.mxu0 0.0
    %124 = vmatprep.subr.mxu0 0.0
    %125 = vmatpush2.msra.mxu0 0.0
    %126 = vmatprep.subr.mxu0 0.0
    %127 = vmatpush2.msra.mxu0 0.0
    %128 = vmatprep.subr.mxu0 0.0
    %129 = vmatpush2.msra.mxu0 0.0
    %130 = vmatprep.subr.mxu0 0.0
    %131 = vmatpush2.msra.mxu0 0.0
    %132 = vmatprep.mubr.f32.mxu0 0.0
    %133 = vmatmul.mubr.f32.gmra.mxu0 %v53
    %v134 = vpop.f32.mrf.mxu0
    %v135 = vadd.f32 %v34, %v134
    %v136 = vpop.f32.mrf.mxu0
    %137 = vmatprep.mubr.f32.mxu0 0.0
    %138 = vmatmul.mubr.f32.gmra.mxu0 %v56
    %v139 = vpop.f32.mrf.mxu0
    %v140 = vadd.f32 %v39, %v139
    %v141 = vpop.f32.mrf.mxu0
    %142 = vmatprep.mubr.f32.mxu0 0.0
    %143 = vmatmul.mubr.f32.gmra.mxu0 %v59
    %v144 = vpop.f32.mrf.mxu0
    %v145 = vadd.f32 %v44, %v144
    %v146 = vpop.f32.mrf.mxu0
    %147 = vmatprep.mubr.f32.mxu0 0.0
    %148 = vmatmul.mubr.f32.gmra.mxu0 %v62
    %v149 = vpop.f32.mrf.mxu0
    %v150 = vadd.f32 %v49, %v149
    %v151 = vpop.f32.mrf.mxu0
    %152 = vdwg.mxu0
    %v153 = vmax.f32 %v135, 0.0
    %v154 = vmax.f32 %v140, 0.0
    %v155 = vmax.f32 %v145, 0.0
    %v156 = vmax.f32 %v150, 0.0
    %v157 = vld [vmem:[%s3] sm:$0xff]
    %v158 = vld [vmem:[%s3 + $0x8] sm:$0xff]
    %v159 = vld [vmem:[%s3 + $0x10] sm:$0xff]
    %v160 = vld [vmem:[%s3 + $0x18] sm:$0xff]
    %162 = vset.pattern.permute.xlu0 0
    %163 = vperm.xlu0 %162, %v157
    %v164 = vpop.permute.xlu0 %163
    %167 = vset.pattern.permute.xlu0 0
    %168 = vperm.xlu0 %167, %v158
    %v169 = vpop.permute.xlu0 %168
    %172 = vset.pattern.permute.xlu0 0
    %173 = vperm.xlu0 %172, %v159
    %v174 = vpop.permute.xlu0 %173
    %177 = vset.pattern.permute.xlu0 0
    %178 = vperm.xlu0 %177, %v160
    %v179 = vpop.permute.xlu0 %178
    %v181 = vmul.f32 %v153, %v164
    %v182 = vmul.f32 %v154, %v169
    %v183 = vmul.f32 %v155, %v174
    %v184 = vmul.f32 %v156, %v179
    %vm185 = vcmask 64512
    %v186 = vsel %vm185, %v181, 0.0
    %v187 = vsel %vm185, %v182, 0.0
    %v188 = vadd.f32 %v186, %v187
    %v189 = vsel %vm185, %v183, 0.0
    %v190 = vadd.f32 %v188, %v189
    %v191 = vsel %vm185, %v184, 0.0
    %v192 = vadd.f32 %v190, %v191
    %v193 = vrot.slane %v192, 4
    %v194 = vadd.f32 %v192, %v193
    %v195 = vrot.slane %v194, 2
    %v196 = vadd.f32 %v194, %v195
    %v197 = vrot.slane %v196, 1
    %v198 = vadd.f32 %v196, %v197
    %s199 = sld [smem:[#allocation2]]
    %v200 = vstv %s199
    %v201 = vadd.f32 %v198, %v200
    %vm202 = vcmask 57344
    %203 = vst.msk [vmem:[#allocation3] sm:$0x1] %vm202, %v201
    // Predicated region
    $region22: #{value_net_forward.1} parent=1 // pred_check
      _
    $region23: #{value_net_forward.1} parent=1 // pred_check_branch
      %205 = sbr.rel (0) target = $region25
    $region24: #{value_net_forward.1} parent=1 // pred_region
      %s207 = ssub.s32 16, 16
      %208 = vsyncadd [#allocation4], %s207
      %s210 = sshll.u32 [#allocation3], 4
      %s211 = int_to_ptr.vmem [resolvable:$true] %s210
      %213 = dma.vmem_to_hbm [thread:$0]  %s211, 16, %s5, [#allocation4]
    $region25: #{value_net_forward.1} parent=1 // pred_fallthru
      _
    // Predicated region
    $region26: #{value_net_forward.1} parent=1 // pred_check
      _
    $region27: #{value_net_forward.1} parent=1 // pred_check_branch
      %215 = sbr.rel (0) target = $region29
    $region28: #{value_net_forward.1} parent=1 // pred_region
      %216 = dma.done [#allocation4], 16
    $region29: #{value_net_forward.1} parent=1 // pred_fallthru
      _
    %217 = vsyncpa [#allocation4], 1

</llo_original>
